<compile_context>
chip_gen: v7x
topology: tpu7x:2x2x1
jax: 0.10.0
libtpu: 0.0.40
codegen_flags: <defaults>
</compile_context>

<pallas_src>
import functools
import math

import jax
import jax.numpy as jnp
from jax.experimental import pallas as pl
from jax.experimental.pallas import tpu as pltpu


def _round_up(x: int, m: int) -> int:
    return ((x + m - 1) // m) * m


# Request less than v7x's 64 MiB/TC physical VMEM (v5e/v6e have 128 MiB, so
# this is safe everywhere).
_VMEM_LIMIT_BYTES = 48 * 1024 * 1024
# Working-set budget used to pick the row tile (leaves headroom under the
# limit above for the pipeline's small target/output buffers).
_VMEM_TILE_BUDGET = 32 * 1024 * 1024


def _pick_row_tile(n: int, c: int, itemsize: int, requested_rows: int) -> int:
    """Largest row tile (multiple of 8) whose VMEM working set fits the budget.

    Per row we account for the double-buffered native-dtype input
    (2 * C * itemsize) plus ~two full-width f32 temporaries inside the exp
    pass (2 * C * 4).  For f32 logits with a ~30K vocab this lands around
    tn = 64, matching the v7x recommendation; bf16 logits allow larger tiles.
    """
    per_row = c * (2 * itemsize + 2 * 4)
    max_rows = max(8, (_VMEM_TILE_BUDGET // per_row) // 8 * 8)
    tn = max(8, min(int(requested_rows), int(max_rows)))
    tn = _round_up(tn, 8)
    tn = min(tn, _round_up(n, 8))
    return tn


def _caption_loss_kernel(logits_ref, target_ref, loss_ref, *,
                         n_class: int, b: float, w_tgt: float, k_const: float):
    x = logits_ref[...]                                   # (TN, C), native dtype
    tgt = target_ref[...]                                 # (TN, 1) int32
    tn, c = x.shape                                       # c == n_class (C un-tiled)

    # ---- pass 1: reductions on the raw (native-dtype) tile -------------------
    # (1, C) class-index plane; broadcast against the (TN, 1) targets in the
    # compare instead of materializing a (TN, C) int32 iota.
    col = jax.lax.broadcasted_iota(jnp.int32, (1, c), 1)
    m = jnp.max(x, axis=1, keepdims=True).astype(jnp.float32)          # (TN, 1)
    x_tgt = jnp.sum(jnp.where(col == tgt, x, jnp.zeros([], x.dtype)),
                    axis=1, keepdims=True, dtype=jnp.float32)          # (TN, 1)

    # ---- pass 2: sum exp(x - m); upcast only inside this pass ---------------
    p_sum = jnp.sum(jnp.exp(x.astype(jnp.float32) - m),
                    axis=1, keepdims=True)                             # (TN, 1)
    lse = jnp.log(p_sum)
    z_tgt = x_tgt - m

    if b != 0.0:
        x_sum = jnp.sum(x, axis=1, keepdims=True, dtype=jnp.float32)   # (TN, 1)
        z_sum = x_sum - n_class * m
        loss = k_const + w_tgt * (lse - z_tgt) + b * (n_class * lse - z_sum)
    else:
        # eps == 0: plain cross-entropy
        loss = lse - z_tgt

    loss_ref[...] = loss                                   # (TN, 1)


def per_token_caption_loss(logits, target, *, label_smoothing: float,
                           block_rows: int = 128):
    """Per-row smoothed-KL captioning loss, shape (N,), computed in Pallas.

    block_rows is an upper bound on the row tile; the actual tile is shrunk so
    the double-buffered input plus in-kernel f32 temporaries fit a 32 MiB VMEM
    budget (safe on v7x's 64 MiB/TC).  Passing bf16 logits halves HBM traffic;
    reductions still accumulate in f32 in-kernel.
    """
    n, c = logits.shape
    eps = float(label_smoothing)

    # host-side constants baked into the kernel
    b = eps / (c - 1) if eps > 0.0 else 0.0
    w_tgt = 1.0 - eps - b
    k_const = 0.0
    if eps > 0.0:
        if (1.0 - eps) > 0.0:
            k_const += (1.0 - eps) * math.log(1.0 - eps)
        k_const += eps * math.log(b)

    tn = _pick_row_tile(n, c, jnp.dtype(logits.dtype).itemsize, block_rows)
    n_pad = _round_up(n, tn)
    if n_pad != n:
        # padded rows (zero logits, target 0) produce finite values that are
        # sliced off before the mean.
        logits = jnp.pad(logits, ((0, n_pad - n), (0, 0)))
        target = jnp.pad(target, (0, n_pad - n))
    target2d = target.astype(jnp.int32).reshape(n_pad, 1)

    kernel = functools.partial(_caption_loss_kernel,
                               n_class=c, b=b, w_tgt=w_tgt, k_const=k_const)
    grid = n_pad // tn

    out = pl.pallas_call(
        kernel,
        out_shape=jax.ShapeDtypeStruct((n_pad, 1), jnp.float32),
        grid_spec=pltpu.PrefetchScalarGridSpec(
            num_scalar_prefetch=0,
            grid=(grid,),
            in_specs=[
                pl.BlockSpec((tn, c), lambda i: (i, 0)),   # logits row tile, C full
                pl.BlockSpec((tn, 1), lambda i: (i, 0)),   # target column
            ],
            out_specs=pl.BlockSpec((tn, 1), lambda i: (i, 0)),
        ),
        compiler_params=pltpu.CompilerParams(
            # rows are independent -> shard the grid across v7x's 2 TensorCores
            dimension_semantics=("parallel",),
            vmem_limit_bytes=_VMEM_LIMIT_BYTES,
        ),
    )(logits, target2d)
    return out[:n, 0]


class OSCARBertCaptioningLoss:
    """JAX/Pallas re-implementation of the PyTorch module (stateful `iter`)."""

    loss_name = "oscar_bert_captioning_loss"

    def __init__(self, label_smoothing=0.0, drop_worst_ratio=0.0,
                 drop_worst_after=0, block_rows=128):
        self.label_smoothing = float(label_smoothing)
        self.drop_worst_ratio = float(drop_worst_ratio)
        self.drop_worst_after = int(drop_worst_after)
        self.block_rows = int(block_rows)
        self.iter = 0

    def __call__(self, model_output):
        logits = model_output["scores"]   # (N, C)
        target = model_output["target"]   # (N,)
        self.iter += 1

        # TODO(synk): like the PyTorch original, there is no ignore-index /
        # padding-token masking here; callers must pre-filter padded targets.
        loss = per_token_caption_loss(
            logits, target,
            label_smoothing=self.label_smoothing,
            block_rows=self.block_rows)

        if self.drop_worst_ratio > 0 and self.iter > self.drop_worst_after:
            # keep the k smallest losses (glue in plain JAX; k is static)
            k = int(loss.shape[0] * (1 - self.drop_worst_ratio))
            neg_topk, _ = jax.lax.top_k(-loss, k)
            loss = -neg_topk

        return jnp.mean(loss)


def _ref_loss(logits, target, eps):
    """Pure-JAX reference mirroring the PyTorch module."""
    n, c = logits.shape
    one_hot = jax.nn.one_hot(target, c, dtype=jnp.float32)
    smoothed = one_hot * (1 - eps) + (1 - one_hot) * eps / (c - 1)
    log_prb = jax.nn.log_softmax(logits.astype(jnp.float32), axis=1)
    safe = jnp.where(smoothed > 0, smoothed, 1.0)
    xlogy = jnp.where(smoothed > 0, smoothed * jnp.log(safe), 0.0)
    kl = xlogy - smoothed * log_prb
    return jnp.mean(jnp.sum(kl, axis=1))


if __name__ == "__main__":
    key = jax.random.PRNGKey(0)
    k1, k2, k3, k4, k5, k6 = jax.random.split(key, 6)

    # --- test 1: small, single tile, label smoothing -------------------------
    N, C = 8, 32
    logits = jax.random.normal(k1, (N, C), dtype=jnp.float32)
    target = jax.random.randint(k2, (N,), 0, C, dtype=jnp.int32)

    loss_mod = OSCARBertCaptioningLoss(label_smoothing=0.1)
    loss = loss_mod({"scores": logits, "target": target})
    jax.block_until_ready(loss)
    ref = _ref_loss(logits, target, 0.1)
    assert jnp.allclose(loss, ref, rtol=1e-5, atol=1e-5), (loss, ref)

    # --- test 2: ragged N (padding path), multi-tile grid, eps = 0 -----------
    N2, C2 = 13, 160
    logits2 = jax.random.normal(k3, (N2, C2), dtype=jnp.float32)
    target2 = jax.random.randint(k4, (N2,), 0, C2, dtype=jnp.int32)

    loss_mod2 = OSCARBertCaptioningLoss(label_smoothing=0.0, block_rows=8)
    loss2 = loss_mod2({"scores": logits2, "target": target2})
    jax.block_until_ready(loss2)
    ref2 = _ref_loss(logits2, target2, 0.0)
    assert jnp.allclose(loss2, ref2, rtol=1e-5, atol=1e-5), (loss2, ref2)

    # --- test 3: bf16 logits (native-dtype reduction path), label smoothing --
    N3, C3 = 16, 256
    logits3 = jax.random.normal(k5, (N3, C3), dtype=jnp.float32).astype(jnp.bfloat16)
    target3 = jax.random.randint(k6, (N3,), 0, C3, dtype=jnp.int32)

    loss_mod3 = OSCARBertCaptioningLoss(label_smoothing=0.1)
    loss3 = loss_mod3({"scores": logits3, "target": target3})
    jax.block_until_ready(loss3)
    # reference on the same bf16-rounded values (f32 math), so only in-kernel
    # accumulation differences remain
    ref3 = _ref_loss(logits3.astype(jnp.float32), target3, 0.1)
    assert jnp.allclose(loss3, ref3, rtol=1e-3, atol=1e-3), (loss3, ref3)

    print("KERNEL_OK")
</pallas_src>

<mosaic_0001>
module attributes {stable_mosaic.version = 11 : i64} {
  func.func @_caption_loss_kernel(%arg0: i32, %arg1: memref<8x32xf32, #tpu.memory_space<vmem>>, %arg2: memref<8x1xi32, #tpu.memory_space<vmem>>, %arg3: memref<8x1xf32, #tpu.memory_space<vmem>>) attributes {dimension_semantics = [#tpu.dimension_semantics<parallel>], iteration_bounds = array<i64: 1>, scalar_prefetch = 0 : i64, scratch_operands = 0 : i64, tpu.core_type = #tpu.core_type<tc>, window_params = [{transform_indices = @transform_0, window_bounds = array<i64: 8, 32>}, {transform_indices = @transform_1, window_bounds = array<i64: 8, 1>}, {transform_indices = @transform_2, window_bounds = array<i64: 8, 1>}]} {
    %c0 = arith.constant 0 : index
    %c0_0 = arith.constant 0 : index
    %0 = vector.load %arg1[%c0, %c0_0] : memref<8x32xf32, #tpu.memory_space<vmem>>, vector<8x32xf32>
    %c0_1 = arith.constant 0 : index
    %c0_2 = arith.constant 0 : index
    %1 = vector.load %arg2[%c0_1, %c0_2] : memref<8x1xi32, #tpu.memory_space<vmem>>, vector<8x1xi32>
    %2 = tpu.iota {dimensions = array<i32: 1>} : vector<1x32xi32>
    %cst = arith.constant dense<0xFF800000> : vector<8xf32>
    %3 = vector.multi_reduction <maximumf>, %0, %cst [1] : vector<8x32xf32> to vector<8xf32>
    %4 = vector.shape_cast %3 : vector<8xf32> to vector<8x1xf32>
    %5 = vector.broadcast %2 : vector<1x32xi32> to vector<8x32xi32>
    %6 = vector.broadcast %1 : vector<8x1xi32> to vector<8x32xi32>
    %7 = arith.cmpi eq, %5, %6 : vector<8x32xi32>
    %cst_3 = arith.constant 0.000000e+00 : f32
    %8 = vector.broadcast %cst_3 : f32 to vector<8x32xf32>
    %9 = arith.select %7, %0, %8 : vector<8x32xi1>, vector<8x32xf32>
    %cst_4 = arith.constant dense<0.000000e+00> : vector<8xf32>
    %10 = vector.multi_reduction <add>, %9, %cst_4 [1] : vector<8x32xf32> to vector<8xf32>
    %11 = vector.shape_cast %10 : vector<8xf32> to vector<8x1xf32>
    %12 = vector.broadcast %4 : vector<8x1xf32> to vector<8x32xf32>
    %13 = arith.subf %0, %12 : vector<8x32xf32>
    %14 = math.exp %13 : vector<8x32xf32>
    %cst_5 = arith.constant dense<0.000000e+00> : vector<8xf32>
    %15 = vector.multi_reduction <add>, %14, %cst_5 [1] : vector<8x32xf32> to vector<8xf32>
    %16 = vector.shape_cast %15 : vector<8xf32> to vector<8x1xf32>
    %17 = math.log %16 : vector<8x1xf32>
    %18 = arith.subf %11, %4 : vector<8x1xf32>
    %cst_6 = arith.constant dense<0.000000e+00> : vector<8xf32>
    %19 = vector.multi_reduction <add>, %0, %cst_6 [1] : vector<8x32xf32> to vector<8xf32>
    %20 = vector.shape_cast %19 : vector<8xf32> to vector<8x1xf32>
    %cst_7 = arith.constant 3.200000e+01 : f32
    %21 = vector.broadcast %cst_7 : f32 to vector<8x1xf32>
    %22 = arith.mulf %21, %4 : vector<8x1xf32>
    %23 = arith.subf %20, %22 : vector<8x1xf32>
    %24 = arith.subf %17, %18 : vector<8x1xf32>
    %cst_8 = arith.constant 0.896774172 : f32
    %25 = vector.broadcast %cst_8 : f32 to vector<8x1xf32>
    %26 = arith.mulf %25, %24 : vector<8x1xf32>
    %cst_9 = arith.constant -0.668481708 : f32
    %27 = vector.broadcast %cst_9 : f32 to vector<8x1xf32>
    %28 = arith.addf %27, %26 : vector<8x1xf32>
    %cst_10 = arith.constant 3.200000e+01 : f32
    %29 = vector.broadcast %cst_10 : f32 to vector<8x1xf32>
    %30 = arith.mulf %29, %17 : vector<8x1xf32>
    %31 = arith.subf %30, %23 : vector<8x1xf32>
    %cst_11 = arith.constant 0.0032258064 : f32
    %32 = vector.broadcast %cst_11 : f32 to vector<8x1xf32>
    %33 = arith.mulf %32, %31 : vector<8x1xf32>
    %34 = arith.addf %28, %33 : vector<8x1xf32>
    %c0_12 = arith.constant 0 : index
    %c0_13 = arith.constant 0 : index
    %35 = vector.load %arg3[%c0_12, %c0_13] : memref<8x1xf32, #tpu.memory_space<vmem>>, vector<8x1xf32>
    tpu.vector_store %arg3[%c0_12, %c0_13], %34 {strides = array<i32>} : memref<8x1xf32, #tpu.memory_space<vmem>>, vector<8x1xf32>,
    return
  }
  func.func @transform_0(%arg0: i32) -> (i32, i32) {
    %c0_i32 = arith.constant 0 : i32
    %c0_i32_0 = arith.constant 0 : i32
    return %arg0, %c0_i32 : i32, i32
  }
  func.func @transform_1(%arg0: i32) -> (i32, i32) {
    %c0_i32 = arith.constant 0 : i32
    %c0_i32_0 = arith.constant 0 : i32
    return %arg0, %c0_i32 : i32, i32
  }
  func.func @transform_2(%arg0: i32) -> (i32, i32) {
    %c0_i32 = arith.constant 0 : i32
    %c0_i32_0 = arith.constant 0 : i32
    return %arg0, %c0_i32 : i32, i32
  }
}

</mosaic_0001>

<llo_original>
// kernel: tpu_custom_call.1
$region0: #{tpu_custom_call.1}
  #allocation0 [shape = 'u32[]', space=smem, size = 0x4, offset = 0x4, fixed_abs, tag = 'smem constant byte address 0x4 - core index']
  #allocation1 [shape = 'u32[144,128]{1,0:T(1,128)}', space=vmem, size = 0x12000, scoped, tag = 'internal scratch']
  %s0 = inlined_call_operand.vmem [shape: f32[8,32], index: 0, kind: input, shape index: {}]
  %s1 = inlined_call_operand.vmem [shape: s32[8,1], index: 1, kind: input, shape index: {}]
  %s2 = inlined_call_operand.vmem [shape: f32[8,1], index: 2, kind: output, shape index: {}]
  %s3 = sld [smem:[#allocation0]]
  $region18: #{tpu_custom_call.1} parent=0
    _
  %s5 = ssub.s32 1, %s3
  %s6 = scalar_select 0, %s5, %s3
  // Predicated region
  $region2: #{tpu_custom_call.1} parent=0 // pred_check
    _
  $region3: #{tpu_custom_call.1} parent=0 // pred_check_branch
    %8 = sbr.rel (0) target = $region5
  $region4: #{tpu_custom_call.1} parent=0 // pred_region
    _
  $region5: #{tpu_custom_call.1} parent=0 // pred_fallthru
    _
  // Predicated region
  $region6: #{tpu_custom_call.1} parent=0 // pred_check
    _
  $region7: #{tpu_custom_call.1} parent=0 // pred_check_branch
    %10 = sbr.rel (0) target = $region9
  $region8: #{tpu_custom_call.1} parent=0 // pred_region
    _
  $region9: #{tpu_custom_call.1} parent=0 // pred_fallthru
    _
  %v11 = vld [vmem:[%s0] sm:$0xff]
  %v12 = vld [vmem:[%s1] sm:$0xff]
  %v13 = vlaneseq
  %v14 = vand.u32 %v13, 127
  %vm15 = vcmask 261120
  %v16 = vsel %vm15, %v11, -inf
  %17 = vmax.xlane.f32.xlu0 %v16
  %v18 = vpop.xlane.xlu0 %17
  %19 = vset.pattern.permute.xlu0 0
  %20 = vperm.xlu0 %19, %v12
  %v21 = vpop.permute.xlu0 %20
  %vm22 = vcmp.eq.s32.totalorder %v14, %v21
  %v23 = vsel %vm22, %v11, 0.0
  %v24 = vsel %vm15, %v23, 0.0
  %25 = vadd.xlane.f32.xlu0 %v24
  %v26 = vpop.xlane.xlu0 %25
  %v27 = vsub.f32 %v11, %v18
  %v28 = vmul.f32 %v27, 1.442695
  %v29 = vpow.pop %v28
  %v30 = vsel %vm15, %v29, 0.0
  %31 = vadd.xlane.f32.xlu0 %v30
  %v32 = vpop.xlane.xlu0 %31
  %v33 = vlog2.pop %v32
  %v34 = vmul.f32 %v33, 0.6931472
  %v35 = vsub.f32 %v26, %v18
  %v36 = vsel %vm15, %v11, 0.0
  %37 = vadd.xlane.f32.xlu0 %v36
  %v38 = vpop.xlane.xlu0 %37
  %v39 = vmul.f32 %v18, 32.0
  %v40 = vsub.f32 %v38, %v39
  %v41 = vsub.f32 %v34, %v35
  %v42 = vmul.f32 %v41, 0.8967742
  %v43 = vadd.f32 %v42, -0.6684817
  %v44 = vmul.f32 %v34, 32.0
  %v45 = vsub.f32 %v44, %v40
  %v46 = vmul.f32 %v45, 0.0032258064
  %v47 = vadd.f32 %v43, %v46
  %vm48 = vcmask 7168
  %49 = vst.msk [vmem:[%s2] sm:$0xff] %vm48, %v47
  // Predicated region
  $region10: #{tpu_custom_call.1} parent=0 // pred_check
    _
  $region11: #{tpu_custom_call.1} parent=0 // pred_check_branch
    %51 = sbr.rel (0) target = $region13
  $region12: #{tpu_custom_call.1} parent=0 // pred_region
    _
  $region13: #{tpu_custom_call.1} parent=0 // pred_fallthru
    _
  // Predicated region
  $region14: #{tpu_custom_call.1} parent=0 // pred_check
    _
  $region15: #{tpu_custom_call.1} parent=0 // pred_check_branch
    %53 = sbr.rel (0) target = $region17
  $region16: #{tpu_custom_call.1} parent=0 // pred_region
    _
  $region17: #{tpu_custom_call.1} parent=0 // pred_fallthru
    _

</llo_original>
